<compile_context>
chip_gen: v6e
topology: v6e:2x2x1
jax: 0.10.0
libtpu: 0.0.40
codegen_flags: <defaults>
</compile_context>

<pallas_src>
import functools

import jax
import jax.numpy as jnp
from jax.experimental import pallas as pl
from jax.experimental.pallas import tpu as pltpu


def _uet_kernel(logits_ref, aff_ref, tgt_ref, alpha_ref, out_ref,
                m_sc, d_sc, sa_sc, sal_sc, tl_sc, *,
                total_rows, tile_rows, total_cols, tile_cols):
    i = pl.program_id(0)            # row-tile index ("parallel")
    j = pl.program_id(1)            # class-tile index ("arbitrary", reduction)
    nj = pl.num_programs(1)

    ragged_rows = (total_rows % tile_rows) != 0     # static (trace-time) flags
    ragged_cols = (total_cols % tile_cols) != 0

    @pl.when(j == 0)
    def _init():
        m_sc[...] = jnp.full(m_sc.shape, -jnp.inf, jnp.float32)
        d_sc[...] = jnp.zeros(d_sc.shape, jnp.float32)
        sa_sc[...] = jnp.zeros(sa_sc.shape, jnp.float32)
        sal_sc[...] = jnp.zeros(sal_sc.shape, jnp.float32)
        tl_sc[...] = jnp.zeros(tl_sc.shape, jnp.float32)

    logits = logits_ref[...]                        # (TB, TC) native dtype
    aff = aff_ref[...]                              # (TB, TC) native dtype
    tgt = tgt_ref[...]                              # (TB, 1) int32
    tb, tc = logits.shape

    logits_f = logits.astype(jnp.float32)           # single f32 cast (exp path)

    # class ids of this chunk as a (1, TC) lane vector (no tile-sized iota)
    cols = tile_cols * j + jax.lax.broadcasted_iota(jnp.int32, (1, tc), 1)

    if ragged_cols:
        # select (not multiply): garbage in the padded column tail cannot leak
        col_ok = cols < total_cols                  # (1, TC)
        logits_f = jnp.where(col_ok, logits_f, -jnp.inf)
        aff_src = jnp.where(col_ok, aff, jnp.zeros([], aff.dtype))
    else:
        aff_src = aff

    # ---- online logsumexp over the class axis --------------------------------
    m_prev = m_sc[...]                              # (TB, 1)
    m_new = jnp.maximum(m_prev, jnp.max(logits_f, axis=1, keepdims=True))
    p = jnp.exp(logits_f - m_new)                   # padded cols -> exp(-inf)=0
    d_sc[...] = d_sc[...] * jnp.exp(m_prev - m_new) + jnp.sum(
        p, axis=1, keepdims=True)
    m_sc[...] = m_new

    # ---- affinity / target reductions (f32 accumulation, no f32 aff copy) ----
    sa_sc[...] += jnp.sum(aff_src, axis=1, keepdims=True, dtype=jnp.float32)

    prod = aff * logits_f                           # bf16 aff promoted -> f32
    if ragged_cols:
        prod = jnp.where(col_ok, prod, 0.0)
    sal_sc[...] += jnp.sum(prod, axis=1, keepdims=True)

    tl_sc[...] += jnp.sum(jnp.where(cols == tgt, logits_f, 0.0),
                          axis=1, keepdims=True)

    # ---- finalize on the last class chunk ------------------------------------
    @pl.when(j == nj - 1)
    def _finalize():
        alphas = alpha_ref[...].astype(jnp.float32)          # (TB, 1)
        z = m_sc[...] + jnp.log(d_sc[...])                   # logsumexp
        per_row = (1.0 - alphas) * (z - tl_sc[...]) \
            + alphas * (z * sa_sc[...] - sal_sc[...])        # (TB, 1)
        if ragged_rows:
            rows = tile_rows * i + jax.lax.broadcasted_iota(jnp.int32, (tb, 1), 0)
            per_row = jnp.where(rows < total_rows, per_row, 0.0)
        partial = jnp.sum(per_row)
        # lane-dense (8, 128) slab, partial in [0, 0]; built once per row tile
        sub = jax.lax.broadcasted_iota(jnp.int32, (8, 128), 0)
        lane = jax.lax.broadcasted_iota(jnp.int32, (8, 128), 1)
        out_ref[...] = jnp.where((sub == 0) & (lane == 0), partial, 0.0)


def _round_up(x, m):
    return ((x + m - 1) // m) * m


def _round_down(x, m):
    return (x // m) * m


def _vmem_budgets():
    """(streaming/footprint budget, vmem_limit_bytes) per TPU generation."""
    cap = None
    try:
        cap = getattr(pltpu.get_tpu_info(), "vmem_capacity_bytes", None)
    except Exception:
        cap = None
    if cap is None:
        cap = 64 * 1024 * 1024                     # conservative fallback
    if cap <= 64 * 1024 * 1024:                    # v7x: 64 MiB VMEM per TC
        return 16 * 1024 * 1024, 48 * 1024 * 1024
    return 48 * 1024 * 1024, 96 * 1024 * 1024      # v5e / v6e: 128 MiB VMEM


def uet_loss(logits, targets, aff_score, alphas=None, alpha=0.3,
             tile_rows=None, tile_cols=None):
    """JAX/Pallas equivalent of UET.forward. Returns a scalar f32 loss.

    Note: out-of-range targets (>= C) silently contribute logit_at_target = 0
    instead of raising like torch scatter_.
    """
    B, C = logits.shape

    it_l = jnp.dtype(logits.dtype).itemsize
    it_a = jnp.dtype(aff_score.dtype).itemsize
    # sublane multiple for the streamed tiles (8 f32 / 16 bf16 / 32 int8)
    sub_mult = 8 * max(1, 4 // max(min(it_l, it_a), 1))

    budget, vmem_limit = _vmem_budgets()
    # bytes per (row, class) tile element: double-buffered logits + aff streams
    # plus ~4 f32-sized in-kernel temporaries (logits_f, exp, aff*logits, mask)
    per_elem = 2 * (it_l + it_a) + 16
    # lane-padded (TB, 1) slabs: 5 f32 scratch accumulators + double-buffered
    # targets / alphas blocks (each pads to 128 lanes in VMEM)
    per_row_fixed = 9 * 128 * 4

    b_pad = _round_up(B, sub_mult)
    # keep >= 2 row tiles when the batch allows it, so the "parallel" axis
    # spans both TensorCores on v7x (free on single-TC v5e/v6e)
    row_cap = b_pad if b_pad <= sub_mult else _round_up((B + 1) // 2, sub_mult)

    max_rows_full_c = max(budget // (C * per_elem + per_row_fixed), 1)

    # ---- class tile -----------------------------------------------------------
    if tile_cols is not None:
        tc = int(tile_cols)
    elif C <= 128 or max_rows_full_c >= min(row_cap, 256):
        tc = C                                      # full class dim per step
    else:
        # class-tiled path for vocab-scale C: keep ~512-row tiles
        tb_target = min(row_cap, 512)
        tc = _round_down(budget // max(tb_target * per_elem, 1), 128)
        tc = max(128, tc)
    tc = C if tc >= C else max(128, _round_down(tc, 128))
    tc = min(tc, C)

    # ---- row tile (cap by bytes, not a fixed row count) -----------------------
    if tile_rows is not None:
        tb = int(tile_rows)
    else:
        tb = max(budget // (tc * per_elem + per_row_fixed), 1)
        tb = min(tb, row_cap)
    tb = B if tb >= B else max(sub_mult, _round_down(tb, sub_mult))
    if tb > B:
        tb = B

    nrt = pl.cdiv(B, tb)
    nct = pl.cdiv(C, tc)

    tgt = targets.reshape(B, 1).astype(jnp.int32)
    if alphas is None:
        alphas_arr = jnp.full((B, 1), alpha, dtype=jnp.float32)
    else:
        alphas_arr = jnp.asarray(alphas, dtype=jnp.float32).reshape(B, 1)

    kernel = functools.partial(_uet_kernel, total_rows=B, tile_rows=tb,
                               total_cols=C, tile_cols=tc)

    partials = pl.pallas_call(
        kernel,
        out_shape=jax.ShapeDtypeStruct((nrt * 8, 128), jnp.float32),
        grid=(nrt, nct),
        in_specs=[
            pl.BlockSpec((tb, tc), lambda i, j: (i, j)),   # logits stream
            pl.BlockSpec((tb, tc), lambda i, j: (i, j)),   # aff stream
            pl.BlockSpec((tb, 1), lambda i, j: (i, 0)),    # targets column
            pl.BlockSpec((tb, 1), lambda i, j: (i, 0)),    # per-row alphas
        ],
        out_specs=pl.BlockSpec((8, 128), lambda i, j: (i, 0)),
        scratch_shapes=[pltpu.VMEM((tb, 1), jnp.float32)] * 5,
        compiler_params=pltpu.CompilerParams(
            dimension_semantics=("parallel", "arbitrary"),
            vmem_limit_bytes=vmem_limit,
        ),
    )(logits, aff_score, tgt, alphas_arr)

    # tiny final reduction over per-row-tile partials; divide by the TRUE B
    return jnp.sum(partials) / jnp.float32(B)


def uet_loss_ref(logits, targets, aff_score, alphas=None, alpha=0.3):
    """Pure-JAX reference for validation."""
    B, C = logits.shape
    lf = logits.astype(jnp.float32)
    af = aff_score.astype(jnp.float32)
    onehot = jax.nn.one_hot(targets, C, dtype=jnp.float32)
    a = jnp.full((B, 1), alpha, jnp.float32) if alphas is None \
        else jnp.asarray(alphas, jnp.float32).reshape(B, 1)
    refined = (1.0 - a) * onehot + a * af
    log_preds = jax.nn.log_softmax(lf, axis=1)
    return jnp.mean(jnp.sum(-refined * log_preds, axis=1))


if __name__ == "__main__":
    key = jax.random.PRNGKey(0)
    k1, k2, k3, k4, k5, k6 = jax.random.split(key, 6)

    # --- test 1: small single-tile case, scalar alpha -------------------------
    B, C = 8, 128
    logits = jax.random.normal(k1, (B, C), dtype=jnp.float32)
    targets = jax.random.randint(k2, (B,), 0, C, dtype=jnp.int32)
    aff = jax.nn.softmax(jax.random.normal(k3, (B, C), dtype=jnp.float32), axis=1)
    out = jax.block_until_ready(uet_loss(logits, targets, aff, alpha=0.3))
    ref = uet_loss_ref(logits, targets, aff, alpha=0.3)
    assert jnp.allclose(out, ref, rtol=1e-5, atol=1e-4), (out, ref)

    # --- test 2: ragged batch + ragged classes + per-sample alphas ------------
    # exercises unpadded boundary blocks, the online logsumexp across class
    # chunks (scratch accumulators) and the in-kernel row/col masks.
    B2, C2 = 20, 192
    logits2 = jax.random.normal(k4, (B2, C2), dtype=jnp.float32) * 2.0
    targets2 = jax.random.randint(k5, (B2,), 0, C2, dtype=jnp.int32)
    aff2 = jax.nn.softmax(jax.random.normal(k6, (B2, C2), dtype=jnp.float32), axis=1)
    alphas2 = jnp.linspace(0.1, 0.9, B2, dtype=jnp.float32)
    out2 = jax.block_until_ready(
        uet_loss(logits2, targets2, aff2, alphas=alphas2,
                 tile_rows=8, tile_cols=128))
    ref2 = uet_loss_ref(logits2, targets2, aff2, alphas=alphas2)
    assert jnp.allclose(out2, ref2, rtol=1e-5, atol=1e-4), (out2, ref2)

    # --- test 3: native bf16 inputs, auto tiling (2 row tiles, parallel axis) --
    B3, C3 = 32, 256
    logits3 = jax.random.normal(k1, (B3, C3), dtype=jnp.float32)
    targets3 = jax.random.randint(k2, (B3,), 0, C3, dtype=jnp.int32)
    aff3 = jax.nn.softmax(logits3 + 0.5, axis=1)
    out3 = jax.block_until_ready(
        uet_loss(logits3.astype(jnp.bfloat16), targets3,
                 aff3.astype(jnp.bfloat16), alpha=0.5))
    ref3 = uet_loss_ref(logits3.astype(jnp.bfloat16), targets3,
                        aff3.astype(jnp.bfloat16), alpha=0.5)
    assert jnp.allclose(out3, ref3, rtol=1e-4, atol=1e-4), (out3, ref3)

    print("KERNEL_OK")
</pallas_src>

<mosaic_0001>
module attributes {stable_mosaic.version = 11 : i64} {
  func.func @_uet_kernel(%arg0: i32, %arg1: i32, %arg2: memref<8x128xf32, #tpu.memory_space<vmem>>, %arg3: memref<8x128xf32, #tpu.memory_space<vmem>>, %arg4: memref<8x1xi32, #tpu.memory_space<vmem>>, %arg5: memref<8x1xf32, #tpu.memory_space<vmem>>, %arg6: memref<8x128xf32, #tpu.memory_space<vmem>>, %arg7: memref<8x1xf32, #tpu.memory_space<vmem>>, %arg8: memref<8x1xf32, #tpu.memory_space<vmem>>, %arg9: memref<8x1xf32, #tpu.memory_space<vmem>>, %arg10: memref<8x1xf32, #tpu.memory_space<vmem>>, %arg11: memref<8x1xf32, #tpu.memory_space<vmem>>) attributes {dimension_semantics = [#tpu.dimension_semantics<parallel>, #tpu.dimension_semantics<arbitrary>], iteration_bounds = array<i64: 1, 1>, scalar_prefetch = 0 : i64, scratch_operands = 5 : i64, tpu.core_type = #tpu.core_type<tc>, window_params = [{transform_indices = @transform_0, window_bounds = array<i64: 8, 128>}, {transform_indices = @transform_1, window_bounds = array<i64: 8, 128>}, {transform_indices = @transform_2, window_bounds = array<i64: 8, 1>}, {transform_indices = @transform_3, window_bounds = array<i64: 8, 1>}, {transform_indices = @transform_4, window_bounds = array<i64: 8, 128>}]} {
    %c0_i32 = arith.constant 0 : i32
    %0 = arith.cmpi eq, %arg1, %c0_i32 : i32
    %1 = arith.extui %0 : i1 to i32
    %c0_i32_0 = arith.constant 0 : i32
    %2 = arith.cmpi ne, %1, %c0_i32_0 : i32
    scf.if %2 {
      %cst_33 = arith.constant 0xFF800000 : f32
      %50 = vector.broadcast %cst_33 : f32 to vector<8x1xf32>
      %c0_34 = arith.constant 0 : index
      %c0_35 = arith.constant 0 : index
      %51 = vector.load %arg7[%c0_34, %c0_35] : memref<8x1xf32, #tpu.memory_space<vmem>>, vector<8x1xf32>
      tpu.vector_store %arg7[%c0_34, %c0_35], %50 {strides = array<i32>} : memref<8x1xf32, #tpu.memory_space<vmem>>, vector<8x1xf32>,
      %cst_36 = arith.constant 0.000000e+00 : f32
      %52 = vector.broadcast %cst_36 : f32 to vector<8x1xf32>
      %c0_37 = arith.constant 0 : index
      %c0_38 = arith.constant 0 : index
      %53 = vector.load %arg8[%c0_37, %c0_38] : memref<8x1xf32, #tpu.memory_space<vmem>>, vector<8x1xf32>
      tpu.vector_store %arg8[%c0_37, %c0_38], %52 {strides = array<i32>} : memref<8x1xf32, #tpu.memory_space<vmem>>, vector<8x1xf32>,
      %cst_39 = arith.constant 0.000000e+00 : f32
      %54 = vector.broadcast %cst_39 : f32 to vector<8x1xf32>
      %c0_40 = arith.constant 0 : index
      %c0_41 = arith.constant 0 : index
      %55 = vector.load %arg9[%c0_40, %c0_41] : memref<8x1xf32, #tpu.memory_space<vmem>>, vector<8x1xf32>
      tpu.vector_store %arg9[%c0_40, %c0_41], %54 {strides = array<i32>} : memref<8x1xf32, #tpu.memory_space<vmem>>, vector<8x1xf32>,
      %cst_42 = arith.constant 0.000000e+00 : f32
      %56 = vector.broadcast %cst_42 : f32 to vector<8x1xf32>
      %c0_43 = arith.constant 0 : index
      %c0_44 = arith.constant 0 : index
      %57 = vector.load %arg10[%c0_43, %c0_44] : memref<8x1xf32, #tpu.memory_space<vmem>>, vector<8x1xf32>
      tpu.vector_store %arg10[%c0_43, %c0_44], %56 {strides = array<i32>} : memref<8x1xf32, #tpu.memory_space<vmem>>, vector<8x1xf32>,
      %cst_45 = arith.constant 0.000000e+00 : f32
      %58 = vector.broadcast %cst_45 : f32 to vector<8x1xf32>
      %c0_46 = arith.constant 0 : index
      %c0_47 = arith.constant 0 : index
      %59 = vector.load %arg11[%c0_46, %c0_47] : memref<8x1xf32, #tpu.memory_space<vmem>>, vector<8x1xf32>
      tpu.vector_store %arg11[%c0_46, %c0_47], %58 {strides = array<i32>} : memref<8x1xf32, #tpu.memory_space<vmem>>, vector<8x1xf32>,
    } else {
    }
    %c0 = arith.constant 0 : index
    %c0_1 = arith.constant 0 : index
    %3 = vector.load %arg2[%c0, %c0_1] : memref<8x128xf32, #tpu.memory_space<vmem>>, vector<8x128xf32>
    %c0_2 = arith.constant 0 : index
    %c0_3 = arith.constant 0 : index
    %4 = vector.load %arg3[%c0_2, %c0_3] : memref<8x128xf32, #tpu.memory_space<vmem>>, vector<8x128xf32>
    %c0_4 = arith.constant 0 : index
    %c0_5 = arith.constant 0 : index
    %5 = vector.load %arg4[%c0_4, %c0_5] : memref<8x1xi32, #tpu.memory_space<vmem>>, vector<8x1xi32>
    %c128_i32 = arith.constant 128 : i32
    %6 = arith.muli %c128_i32, %arg1 : i32
    %7 = tpu.iota {dimensions = array<i32: 1>} : vector<1x128xi32>
    %8 = vector.broadcast %6 : i32 to vector<1x128xi32>
    %9 = arith.addi %8, %7 : vector<1x128xi32>
    %c0_6 = arith.constant 0 : index
    %c0_7 = arith.constant 0 : index
    %10 = vector.load %arg7[%c0_6, %c0_7] : memref<8x1xf32, #tpu.memory_space<vmem>>, vector<8x1xf32>
    %cst = arith.constant dense<0xFF800000> : vector<8xf32>
    %11 = vector.multi_reduction <maximumf>, %3, %cst [1] : vector<8x128xf32> to vector<8xf32>
    %12 = vector.shape_cast %11 : vector<8xf32> to vector<8x1xf32>
    %13 = arith.maximumf %10, %12 : vector<8x1xf32>
    %14 = vector.broadcast %13 : vector<8x1xf32> to vector<8x128xf32>
    %15 = arith.subf %3, %14 : vector<8x128xf32>
    %16 = math.exp %15 : vector<8x128xf32>
    %c0_8 = arith.constant 0 : index
    %c0_9 = arith.constant 0 : index
    %17 = vector.load %arg8[%c0_8, %c0_9] : memref<8x1xf32, #tpu.memory_space<vmem>>, vector<8x1xf32>
    %18 = arith.subf %10, %13 : vector<8x1xf32>
    %19 = math.exp %18 : vector<8x1xf32>
    %20 = arith.mulf %17, %19 : vector<8x1xf32>
    %cst_10 = arith.constant dense<0.000000e+00> : vector<8xf32>
    %21 = vector.multi_reduction <add>, %16, %cst_10 [1] : vector<8x128xf32> to vector<8xf32>
    %22 = vector.shape_cast %21 : vector<8xf32> to vector<8x1xf32>
    %23 = arith.addf %20, %22 : vector<8x1xf32>
    %c0_11 = arith.constant 0 : index
    %c0_12 = arith.constant 0 : index
    %24 = vector.load %arg8[%c0_11, %c0_12] : memref<8x1xf32, #tpu.memory_space<vmem>>, vector<8x1xf32>
    tpu.vector_store %arg8[%c0_11, %c0_12], %23 {strides = array<i32>} : memref<8x1xf32, #tpu.memory_space<vmem>>, vector<8x1xf32>,
    %c0_13 = arith.constant 0 : index
    %c0_14 = arith.constant 0 : index
    %25 = vector.load %arg7[%c0_13, %c0_14] : memref<8x1xf32, #tpu.memory_space<vmem>>, vector<8x1xf32>
    tpu.vector_store %arg7[%c0_13, %c0_14], %13 {strides = array<i32>} : memref<8x1xf32, #tpu.memory_space<vmem>>, vector<8x1xf32>,
    %c0_15 = arith.constant 0 : index
    %c0_16 = arith.constant 0 : index
    %26 = vector.load %arg9[%c0_15, %c0_16] : memref<8x1xf32, #tpu.memory_space<vmem>>, vector<8x1xf32>
    %cst_17 = arith.constant dense<0.000000e+00> : vector<8xf32>
    %27 = vector.multi_reduction <add>, %4, %cst_17 [1] : vector<8x128xf32> to vector<8xf32>
    %28 = vector.shape_cast %27 : vector<8xf32> to vector<8x1xf32>
    %29 = arith.addf %26, %28 : vector<8x1xf32>
    %c0_18 = arith.constant 0 : index
    %c0_19 = arith.constant 0 : index
    %30 = vector.load %arg9[%c0_18, %c0_19] : memref<8x1xf32, #tpu.memory_space<vmem>>, vector<8x1xf32>
    tpu.vector_store %arg9[%c0_18, %c0_19], %29 {strides = array<i32>} : memref<8x1xf32, #tpu.memory_space<vmem>>, vector<8x1xf32>,
    %31 = arith.mulf %4, %3 : vector<8x128xf32>
    %c0_20 = arith.constant 0 : index
    %c0_21 = arith.constant 0 : index
    %32 = vector.load %arg10[%c0_20, %c0_21] : memref<8x1xf32, #tpu.memory_space<vmem>>, vector<8x1xf32>
    %cst_22 = arith.constant dense<0.000000e+00> : vector<8xf32>
    %33 = vector.multi_reduction <add>, %31, %cst_22 [1] : vector<8x128xf32> to vector<8xf32>
    %34 = vector.shape_cast %33 : vector<8xf32> to vector<8x1xf32>
    %35 = arith.addf %32, %34 : vector<8x1xf32>
    %c0_23 = arith.constant 0 : index
    %c0_24 = arith.constant 0 : index
    %36 = vector.load %arg10[%c0_23, %c0_24] : memref<8x1xf32, #tpu.memory_space<vmem>>, vector<8x1xf32>
    tpu.vector_store %arg10[%c0_23, %c0_24], %35 {strides = array<i32>} : memref<8x1xf32, #tpu.memory_space<vmem>>, vector<8x1xf32>,
    %c0_25 = arith.constant 0 : index
    %c0_26 = arith.constant 0 : index
    %37 = vector.load %arg11[%c0_25, %c0_26] : memref<8x1xf32, #tpu.memory_space<vmem>>, vector<8x1xf32>
    %38 = vector.broadcast %9 : vector<1x128xi32> to vector<8x128xi32>
    %39 = vector.broadcast %5 : vector<8x1xi32> to vector<8x128xi32>
    %40 = arith.cmpi eq, %38, %39 : vector<8x128xi32>
    %cst_27 = arith.constant 0.000000e+00 : f32
    %41 = vector.broadcast %cst_27 : f32 to vector<8x128xf32>
    %42 = arith.select %40, %3, %41 : vector<8x128xi1>, vector<8x128xf32>
    %cst_28 = arith.constant dense<0.000000e+00> : vector<8xf32>
    %43 = vector.multi_reduction <add>, %42, %cst_28 [1] : vector<8x128xf32> to vector<8xf32>
    %44 = vector.shape_cast %43 : vector<8xf32> to vector<8x1xf32>
    %45 = arith.addf %37, %44 : vector<8x1xf32>
    %c0_29 = arith.constant 0 : index
    %c0_30 = arith.constant 0 : index
    %46 = vector.load %arg11[%c0_29, %c0_30] : memref<8x1xf32, #tpu.memory_space<vmem>>, vector<8x1xf32>
    tpu.vector_store %arg11[%c0_29, %c0_30], %45 {strides = array<i32>} : memref<8x1xf32, #tpu.memory_space<vmem>>, vector<8x1xf32>,
    %c0_i32_31 = arith.constant 0 : i32
    %47 = arith.cmpi eq, %arg1, %c0_i32_31 : i32
    %48 = arith.extui %47 : i1 to i32
    %c0_i32_32 = arith.constant 0 : i32
    %49 = arith.cmpi ne, %48, %c0_i32_32 : i32
    scf.if %49 {
      %c0_33 = arith.constant 0 : index
      %c0_34 = arith.constant 0 : index
      %50 = vector.load %arg5[%c0_33, %c0_34] : memref<8x1xf32, #tpu.memory_space<vmem>>, vector<8x1xf32>
      %c0_35 = arith.constant 0 : index
      %c0_36 = arith.constant 0 : index
      %51 = vector.load %arg7[%c0_35, %c0_36] : memref<8x1xf32, #tpu.memory_space<vmem>>, vector<8x1xf32>
      %c0_37 = arith.constant 0 : index
      %c0_38 = arith.constant 0 : index
      %52 = vector.load %arg8[%c0_37, %c0_38] : memref<8x1xf32, #tpu.memory_space<vmem>>, vector<8x1xf32>
      %53 = math.log %52 : vector<8x1xf32>
      %54 = arith.addf %51, %53 : vector<8x1xf32>
      %cst_39 = arith.constant 1.000000e+00 : f32
      %55 = vector.broadcast %cst_39 : f32 to vector<8x1xf32>
      %56 = arith.subf %55, %50 : vector<8x1xf32>
      %c0_40 = arith.constant 0 : index
      %c0_41 = arith.constant 0 : index
      %57 = vector.load %arg11[%c0_40, %c0_41] : memref<8x1xf32, #tpu.memory_space<vmem>>, vector<8x1xf32>
      %58 = arith.subf %54, %57 : vector<8x1xf32>
      %59 = arith.mulf %56, %58 : vector<8x1xf32>
      %c0_42 = arith.constant 0 : index
      %c0_43 = arith.constant 0 : index
      %60 = vector.load %arg9[%c0_42, %c0_43] : memref<8x1xf32, #tpu.memory_space<vmem>>, vector<8x1xf32>
      %61 = arith.mulf %54, %60 : vector<8x1xf32>
      %c0_44 = arith.constant 0 : index
      %c0_45 = arith.constant 0 : index
      %62 = vector.load %arg10[%c0_44, %c0_45] : memref<8x1xf32, #tpu.memory_space<vmem>>, vector<8x1xf32>
      %63 = arith.subf %61, %62 : vector<8x1xf32>
      %64 = arith.mulf %50, %63 : vector<8x1xf32>
      %65 = arith.addf %59, %64 : vector<8x1xf32>
      %66 = vector.shape_cast %65 : vector<8x1xf32> to vector<1x8x1xf32>
      %cst_46 = arith.constant dense<0.000000e+00> : vector<1xf32>
      %67 = vector.multi_reduction <add>, %66, %cst_46 [1, 2] : vector<1x8x1xf32> to vector<1xf32>
      %68 = vector.shape_cast %67 : vector<1xf32> to vector<1x1x1xf32>
      %69 = vector.extract %68[0, 0, 0] : f32 from vector<1x1x1xf32>
      %70 = tpu.iota {dimensions = array<i32: 0>} : vector<8x128xi32>
      %71 = tpu.iota {dimensions = array<i32: 1>} : vector<8x128xi32>
      %c0_i32_47 = arith.constant 0 : i32
      %72 = vector.broadcast %c0_i32_47 : i32 to vector<8x128xi32>
      %73 = arith.cmpi eq, %70, %72 : vector<8x128xi32>
      %c0_i32_48 = arith.constant 0 : i32
      %74 = vector.broadcast %c0_i32_48 : i32 to vector<8x128xi32>
      %75 = arith.cmpi eq, %71, %74 : vector<8x128xi32>
      %76 = arith.andi %73, %75 : vector<8x128xi1>
      %cst_49 = arith.constant 0.000000e+00 : f32
      %77 = vector.broadcast %69 : f32 to vector<8x128xf32>
      %78 = vector.broadcast %cst_49 : f32 to vector<8x128xf32>
      %79 = arith.select %76, %77, %78 : vector<8x128xi1>, vector<8x128xf32>
      %c0_50 = arith.constant 0 : index
      %c0_51 = arith.constant 0 : index
      %80 = vector.load %arg6[%c0_50, %c0_51] : memref<8x128xf32, #tpu.memory_space<vmem>>, vector<8x128xf32>
      tpu.vector_store %arg6[%c0_50, %c0_51], %79 {strides = array<i32>} : memref<8x128xf32, #tpu.memory_space<vmem>>, vector<8x128xf32>,
    } else {
    }
    return
  }
  func.func @transform_0(%arg0: i32, %arg1: i32) -> (i32, i32) {
    %c0_i32 = arith.constant 0 : i32
    return %arg0, %arg1 : i32, i32
  }
  func.func @transform_1(%arg0: i32, %arg1: i32) -> (i32, i32) {
    %c0_i32 = arith.constant 0 : i32
    return %arg0, %arg1 : i32, i32
  }
  func.func @transform_2(%arg0: i32, %arg1: i32) -> (i32, i32) {
    %c0_i32 = arith.constant 0 : i32
    %c0_i32_0 = arith.constant 0 : i32
    return %arg0, %c0_i32 : i32, i32
  }
  func.func @transform_3(%arg0: i32, %arg1: i32) -> (i32, i32) {
    %c0_i32 = arith.constant 0 : i32
    %c0_i32_0 = arith.constant 0 : i32
    return %arg0, %c0_i32 : i32, i32
  }
  func.func @transform_4(%arg0: i32, %arg1: i32) -> (i32, i32) {
    %c0_i32 = arith.constant 0 : i32
    %c0_i32_0 = arith.constant 0 : i32
    return %arg0, %c0_i32 : i32, i32
  }
}

</mosaic_0001>

<llo_original>
// kernel: tpu_custom_call.1
$region0: #{tpu_custom_call.1}
  #allocation0 [shape = 'u32[]', space=smem, size = 0x4, offset = 0x4, fixed_abs, tag = 'smem constant byte address 0x4 - core index']
  #allocation1 [shape = 'u32[144,128]{1,0:T(1,128)}', space=vmem, size = 0x12000, scoped, tag = 'internal scratch']
  #allocation2 [shape = 'f32[8,1]{1,0:T(8,128)}', space=vmem, size = 0x1000, scoped, tag = 'scratch operand']
  #allocation3 [shape = 'f32[8,1]{1,0:T(8,128)}', space=vmem, size = 0x1000, scoped, tag = 'scratch operand']
  #allocation4 [shape = 'f32[8,1]{1,0:T(8,128)}', space=vmem, size = 0x1000, scoped, tag = 'scratch operand']
  #allocation5 [shape = 'f32[8,1]{1,0:T(8,128)}', space=vmem, size = 0x1000, scoped, tag = 'scratch operand']
  #allocation6 [shape = 'f32[8,1]{1,0:T(8,128)}', space=vmem, size = 0x1000, scoped, tag = 'scratch operand']
  %s0 = inlined_call_operand.vmem [shape: f32[8,128], index: 0, kind: input, shape index: {}]
  %s1 = inlined_call_operand.vmem [shape: f32[8,128], index: 1, kind: input, shape index: {}]
  %s2 = inlined_call_operand.vmem [shape: s32[8,1], index: 2, kind: input, shape index: {}]
  %s3 = inlined_call_operand.vmem [shape: f32[8,1], index: 3, kind: input, shape index: {}]
  %s4 = inlined_call_operand.hbm [shape: f32[8,128], index: 4, kind: output, shape index: {}]
  %s5 = sld [smem:[#allocation0]]
  $region34: #{tpu_custom_call.1} parent=0
    _
  %s7 = ssub.s32 1, %s5
  %s8 = scalar_select 0, %s7, %s5
  $region1: #{tpu_custom_call.1} parent=0
    #allocation7 [shape = 'u8[4096]{0}', space=vmem, size = 0x1000, scoped, tag = 'output window, operand 0, single buffered']
    #allocation8 [shape = 's32[1]{0}', space=sflag, size = 0x4, scoped, tag = 'scoped memory for tpu_custom_call.1']
    %9 = vsyncpa [#allocation8], 0
    // Predicated region
    $region2: #{tpu_custom_call.1} parent=1 // pred_check
      _
    $region3: #{tpu_custom_call.1} parent=1 // pred_check_branch
      %11 = sbr.rel (0) target = $region5
    $region4: #{tpu_custom_call.1} parent=1 // pred_region
      _
    $region5: #{tpu_custom_call.1} parent=1 // pred_fallthru
      _
    // Predicated region
    $region6: #{tpu_custom_call.1} parent=1 // pred_check
      _
    $region7: #{tpu_custom_call.1} parent=1 // pred_check_branch
      %13 = sbr.rel (0) target = $region9
    $region8: #{tpu_custom_call.1} parent=1 // pred_region
      _
    $region9: #{tpu_custom_call.1} parent=1 // pred_fallthru
      _
    // Predicated region
    $region10: #{tpu_custom_call.1} parent=1 // pred_check
      _
    $region11: #{tpu_custom_call.1} parent=1 // pred_check_branch
      %15 = sbr.rel (0) target = $region13
    $region12: #{tpu_custom_call.1} parent=1 // pred_region
      _
    $region13: #{tpu_custom_call.1} parent=1 // pred_fallthru
      _
    // Predicated region
    $region14: #{tpu_custom_call.1} parent=1 // pred_check
      _
    $region15: #{tpu_custom_call.1} parent=1 // pred_check_branch
      %17 = sbr.rel (0) target = $region17
    $region16: #{tpu_custom_call.1} parent=1 // pred_region
      _
    $region17: #{tpu_custom_call.1} parent=1 // pred_fallthru
      _
    %p18 = scmp.eq.s32.totalorder 0, 0
    // Predicated region
    $region18: #{tpu_custom_call.1} parent=1 // pred_check
      %p19 = pneg %p18
    $region19: #{tpu_custom_call.1} parent=1 // pred_check_branch
      %21 = sbr.rel (%p19) target = $region21
    $region20: #{tpu_custom_call.1} parent=1 // pred_region
      %vm22 = vcmask 7168
      %23 = vst.msk [vmem:[#allocation2] sm:$0xff] %vm22, -inf
      %24 = vst.msk [vmem:[#allocation3] sm:$0xff] %vm22, 0.0
      %25 = vst.msk [vmem:[#allocation4] sm:$0xff] %vm22, 0.0
      %26 = vst.msk [vmem:[#allocation5] sm:$0xff] %vm22, 0.0
      %27 = vst.msk [vmem:[#allocation6] sm:$0xff] %vm22, 0.0
    $region21: #{tpu_custom_call.1} parent=1 // pred_fallthru
      _
    %v28 = vld [vmem:[%s0] sm:$0xff]
    %v29 = vld [vmem:[%s1] sm:$0xff]
    %v30 = vld [vmem:[%s2] sm:$0xff]
    %s31 = smul.u32 0, 128
    %v32 = vlaneseq
    %v33 = vand.u32 %v32, 127
    %v34 = vstv %s31
    %v35 = vadd.s32 %v34, %v33
    %v36 = vld [vmem:[#allocation2] sm:$0xff]
    %37 = vmax.xlane.f32.xlu0 %v28
    %v38 = vpop.xlane.xlu0 %37
    %v39 = vmax.f32 %v36, %v38
    %41 = vset.pattern.permute.xlu0 0
    %42 = vperm.xlu0 %41, %v39
    %v43 = vpop.permute.xlu0 %42
    %v45 = vsub.f32 %v28, %v43
    %v46 = vmul.f32 %v45, 1.442695
    %v47 = vpow.pop %v46
    %v48 = vld [vmem:[#allocation3] sm:$0xff]
    %v49 = vsub.f32 %v36, %v39
    %v50 = vmul.f32 %v49, 1.442695
    %v51 = vpow.pop %v50
    %v52 = vmul.f32 %v48, %v51
    %53 = vadd.xlane.f32.xlu0 %v47
    %v54 = vpop.xlane.xlu0 %53
    %v55 = vadd.f32 %v52, %v54
    %vm56 = vcmask 7168
    %57 = vst.msk [vmem:[#allocation3] sm:$0xff] %vm56, %v55
    %58 = vst.msk [vmem:[#allocation2] sm:$0xff] %vm56, %v39
    %v59 = vld [vmem:[#allocation4] sm:$0xff]
    %60 = vadd.xlane.f32.xlu0 %v29
    %v61 = vpop.xlane.xlu0 %60
    %v62 = vadd.f32 %v59, %v61
    %63 = vst.msk [vmem:[#allocation4] sm:$0xff] %vm56, %v62
    %v64 = vmul.f32 %v29, %v28
    %v65 = vld [vmem:[#allocation5] sm:$0xff]
    %66 = vadd.xlane.f32.xlu0 %v64
    %v67 = vpop.xlane.xlu0 %66
    %v68 = vadd.f32 %v65, %v67
    %69 = vst.msk [vmem:[#allocation5] sm:$0xff] %vm56, %v68
    %v70 = vld [vmem:[#allocation6] sm:$0xff]
    %71 = vset.pattern.permute.xlu0 0
    %72 = vperm.xlu0 %71, %v30
    %v73 = vpop.permute.xlu0 %72
    %vm74 = vcmp.eq.s32.totalorder %v35, %v73
    %v75 = vsel %vm74, %v28, 0.0
    %76 = vadd.xlane.f32.xlu0 %v75
    %v77 = vpop.xlane.xlu0 %76
    %v78 = vadd.f32 %v70, %v77
    %79 = vst.msk [vmem:[#allocation6] sm:$0xff] %vm56, %v78
    // Predicated region
    $region22: #{tpu_custom_call.1} parent=1 // pred_check
      %p80 = pneg %p18
    $region23: #{tpu_custom_call.1} parent=1 // pred_check_branch
      %82 = sbr.rel (%p80) target = $region25
    $region24: #{tpu_custom_call.1} parent=1 // pred_region
      %v83 = vld [vmem:[%s3] sm:$0xff]
      %v84 = vld [vmem:[#allocation2] sm:$0xff]
      %v85 = vld [vmem:[#allocation3] sm:$0xff]
      %v86 = vlog2.pop %v85
      %v87 = vmul.f32 %v86, 0.6931472
      %v88 = vadd.f32 %v84, %v87
      %v89 = vsub.f32 1.0, %v83
      %v90 = vld [vmem:[#allocation6] sm:$0xff]
      %v91 = vsub.f32 %v88, %v90
      %v92 = vmul.f32 %v89, %v91
      %v93 = vld [vmem:[#allocation4] sm:$0xff]
      %v94 = vmul.f32 %v88, %v93
      %v95 = vld [vmem:[#allocation5] sm:$0xff]
      %v96 = vsub.f32 %v94, %v95
      %v97 = vmul.f32 %v83, %v96
      %v98 = vadd.f32 %v92, %v97
      %v99 = vsel %vm56, %v98, 0.0
      %100 = vadd.xlane.f32.xlu0 %v99
      %v101 = vpop.xlane.xlu0 %100
      %v102 = vrot.slane %v101, 4
      %v103 = vadd.f32 %v101, %v102
      %v104 = vrot.slane %v103, 2
      %v105 = vadd.f32 %v103, %v104
      %v106 = vrot.slane %v105, 1
      %v107 = vadd.f32 %v105, %v106
      %s108 = vtos %v107
      %v109 = vlaneseq
      %v110 = vshrl.u32 %v109, 7
      %vm111 = vcmp.eq.s32.totalorder %v110, 0
      %vm112 = vcmp.eq.s32.totalorder %v33, 0
      %vm113 = vmand %vm111, %vm112
      %v114 = vstv %s108
      %v115 = vsel %vm113, %v114, 0.0
      %116 = vst [vmem:[#allocation7] sm:$0xff] %v115
    $region25: #{tpu_custom_call.1} parent=1 // pred_fallthru
      _
    // Predicated region
    $region26: #{tpu_custom_call.1} parent=1 // pred_check
      _
    $region27: #{tpu_custom_call.1} parent=1 // pred_check_branch
      %118 = sbr.rel (0) target = $region29
    $region28: #{tpu_custom_call.1} parent=1 // pred_region
      %s120 = ssub.s32 128, 128
      %121 = vsyncadd [#allocation8], %s120
      %s123 = sshll.u32 [#allocation7], 4
      %s124 = int_to_ptr.vmem [resolvable:$true] %s123
      %126 = dma.vmem_to_hbm [thread:$0]  %s124, 128, %s4, [#allocation8]
    $region29: #{tpu_custom_call.1} parent=1 // pred_fallthru
      _
    // Predicated region
    $region30: #{tpu_custom_call.1} parent=1 // pred_check
      _
    $region31: #{tpu_custom_call.1} parent=1 // pred_check_branch
      %128 = sbr.rel (0) target = $region33
    $region32: #{tpu_custom_call.1} parent=1 // pred_region
      %129 = dma.done [#allocation8], 128
    $region33: #{tpu_custom_call.1} parent=1 // pred_fallthru
      _
    %130 = vsyncpa [#allocation8], 1

</llo_original>
